<compile_context>
chip_gen: v7x
topology: tpu7x:2x2x1
jax: 0.10.0
libtpu: 0.0.40
codegen_flags: <defaults>
</compile_context>

<pallas_src>
import functools
from typing import NamedTuple

import jax
import jax.numpy as jnp
from jax.experimental import pallas as pl
from jax.experimental.pallas import tpu as pltpu


def _round_up(x, m):
    return ((x + m - 1) // m) * m


def _vmem_capacity_bytes():
    """Physical VMEM per TensorCore (v5e/v6e: 128 MiB, v7x: 64 MiB)."""
    try:
        return int(pltpu.get_tpu_info().vmem_capacity_bytes)
    except Exception:
        return 64 << 20  # conservative (v7x-sized) fallback


def _choose_tile_m(M, target, sub):
    """Pick a row tile that avoids per-call activation padding when possible.

    Returns (tile_m, M_pad)."""
    if M <= target:
        return M, M                        # one full-extent block (always legal)
    t = target
    floor = max(sub, target // 2)
    while t >= floor:
        if M % t == 0:
            return t, M                    # exact divisor -> no row padding
        t -= sub
    return target, _round_up(M, target)    # fallback: pad rows up to the grid


def _mlp_kernel(x_ref, w1_ref, b1_ref, w2_ref, b2_ref, o_ref, *, approximate_gelu):
    # x_ref : (TM, d_in_p)       VMEM (pipelined)
    # w1_ref: (d_in_p, d_h_p)    VMEM (resident, single-buffered)
    # b1_ref: (1, d_h_p) f32     VMEM (resident)
    # w2_ref: (d_h_p, d_out_p)   VMEM (resident, single-buffered)
    # b2_ref: (1, d_out_p) f32   VMEM (resident)
    # o_ref : (TM, d_out_p)      VMEM (pipelined)

    # Cast activations to the weight storage dtype so both matmuls take the
    # native (bf16/f32) MXU path instead of a mixed-dtype promotion.
    x = x_ref[...].astype(w1_ref.dtype)

    # fc1: x @ W1 (f32 MXU accumulation) + b1
    h = jnp.dot(x, w1_ref[...], preferred_element_type=jnp.float32)
    h = h + b1_ref[...]

    if approximate_gelu:
        # tanh-approximate GELU -> EUP slot (opt-in; differs slightly from torch default)
        h = jax.nn.gelu(h, approximate=True)
    else:
        # exact (erf-based) GELU, matching torch.nn.GELU() default
        h = 0.5 * h * (1.0 + jax.lax.erf(h * jnp.float32(0.7071067811865476)))

    # dropout(p=0.0) / eval mode is identity.
    # TODO(synk): training-mode dropout (stochastic masking via pltpu PRNG) not implemented.

    # fc2: h @ W2 + b2
    out = jnp.dot(h.astype(w2_ref.dtype), w2_ref[...],
                  preferred_element_type=jnp.float32)
    out = out + b2_ref[...]
    o_ref[...] = out.astype(o_ref.dtype)


class MLPParams(NamedTuple):
    w1: jax.Array   # (d_in_p, d_h_p)  pre-transposed, zero-padded
    b1: jax.Array   # (1, d_h_p)  f32
    w2: jax.Array   # (d_h_p, d_out_p) pre-transposed, zero-padded
    b2: jax.Array   # (1, d_out_p) f32
    d_in: int       # original (unpadded) feature dims
    d_out: int


def prepare_mlp_params(w1, b1, w2, b2, *, param_dtype=None):
    """One-time parameter prep (NOT in the per-forward hot path).

    torch nn.Linear layout: w1 (d_h, d_in), w2 (d_out, d_h).
      * transposes to (d_in, d_h) / (d_h, d_out)
      * zero-pads d_in / d_h / d_out to multiples of 128 (lane-dense MXU tiles);
        exact because GELU(0) == 0 and the padded rows/cols are zero
      * optionally casts weights to a storage dtype (bf16 halves DMA/resident
        VMEM and keeps both matmuls on the native bf16 MXU).
    Biases stay f32 (added to the f32 MXU accumulator)."""
    d_h, d_in = w1.shape
    d_out = w2.shape[0]
    d_in_p, d_h_p, d_out_p = (_round_up(d, 128) for d in (d_in, d_h, d_out))

    w1_t = jnp.zeros((d_in_p, d_h_p), jnp.float32)
    w1_t = w1_t.at[:d_in, :d_h].set(jnp.transpose(w1).astype(jnp.float32))
    w2_t = jnp.zeros((d_h_p, d_out_p), jnp.float32)
    w2_t = w2_t.at[:d_h, :d_out].set(jnp.transpose(w2).astype(jnp.float32))
    b1_p = jnp.zeros((1, d_h_p), jnp.float32).at[0, :d_h].set(jnp.asarray(b1, jnp.float32))
    b2_p = jnp.zeros((1, d_out_p), jnp.float32).at[0, :d_out].set(jnp.asarray(b2, jnp.float32))

    if param_dtype is not None:
        w1_t = w1_t.astype(param_dtype)
        w2_t = w2_t.astype(param_dtype)

    return MLPParams(w1_t, b1_p, w2_t, b2_p, d_in, d_out)


def mlp_pallas(x, params: MLPParams, *, tile_m=512, approximate_gelu=False):
    """x: (..., d_in).  Returns (..., d_out) = fc2(GELU(fc1(x))), eval-mode dropout."""
    w1_t, b1, w2_t, b2, d_in, d_out = params
    *lead, d_in_x = x.shape
    assert d_in_x == d_in, f"x feature dim {d_in_x} != prepared d_in {d_in}"
    d_in_p, d_h_p = w1_t.shape
    d_out_p = w2_t.shape[1]

    M = 1
    for s in lead:
        M *= s
    xm = x.reshape(M, d_in)

    # Feature-dim padding only when the model dim is not lane-aligned
    # (real ViT dims 768/3072/768 skip this entirely).
    if d_in_p != d_in:
        xm = jnp.pad(xm, ((0, 0), (0, d_in_p - d_in)))

    x_isz = jnp.dtype(x.dtype).itemsize
    w_isz = jnp.dtype(w1_t.dtype).itemsize
    sub = 8 * max(1, 4 // x_isz)  # sublane granularity for the x dtype

    # ---- per-generation VMEM budget ---------------------------------------
    vmem_cap = _vmem_capacity_bytes()
    vmem_budget = int(0.82 * vmem_cap)  # headroom for compiler scratch / semaphores

    w_bytes = (d_in_p * d_h_p + d_h_p * d_out_p) * w_isz + (d_h_p + d_out_p) * 4

    def footprint(tm):
        # double-buffered x/out tiles + resident weights/biases + f32 hidden tile
        return 2 * tm * (d_in_p + d_out_p) * x_isz + w_bytes + tm * d_h_p * 4

    tile_target = max(sub, (min(tile_m, _round_up(M, sub)) // sub) * sub)
    while tile_target > sub and footprint(tile_target) > vmem_budget:
        tile_target = max(sub, (tile_target // 2 // sub) * sub)
    # TODO(synk): for very large d_h with f32 weights on v7x (64 MiB/TC), stream
    # W2 over a d_h grid axis (f32 accumulator + pl.when init/finalize) instead
    # of keeping it fully resident.

    tile_m, M_pad = _choose_tile_m(M, tile_target, sub)
    if M_pad != M:
        xm = jnp.pad(xm, ((0, M_pad - M), (0, 0)))

    grid = (M_pad // tile_m,)

    vmem_limit = int(min(max(footprint(tile_m) + (8 << 20), 32 << 20), vmem_budget))

    cost = pl.CostEstimate(
        flops=2 * M_pad * (d_in_p * d_h_p + d_h_p * d_out_p),
        transcendentals=M_pad * d_h_p,
        bytes_accessed=(M_pad * d_in_p * x_isz
                        + (d_in_p * d_h_p + d_h_p * d_out_p) * w_isz
                        + M_pad * d_out_p * x_isz),
    )

    resident = pl.Buffered(1)  # constant index_map -> no need to double-buffer
    kernel = functools.partial(_mlp_kernel, approximate_gelu=approximate_gelu)

    out = pl.pallas_call(
        kernel,
        out_shape=jax.ShapeDtypeStruct((M_pad, d_out_p), x.dtype),
        grid_spec=pltpu.PrefetchScalarGridSpec(
            num_scalar_prefetch=0,
            grid=grid,
            in_specs=[
                pl.BlockSpec((tile_m, d_in_p), lambda i: (i, 0)),      # x rows (pipelined)
                pl.BlockSpec((d_in_p, d_h_p), lambda i: (0, 0),
                             pipeline_mode=resident),                  # W1^T (resident)
                pl.BlockSpec((1, d_h_p), lambda i: (0, 0),
                             pipeline_mode=resident),                  # b1
                pl.BlockSpec((d_h_p, d_out_p), lambda i: (0, 0),
                             pipeline_mode=resident),                  # W2^T (resident)
                pl.BlockSpec((1, d_out_p), lambda i: (0, 0),
                             pipeline_mode=resident),                  # b2
            ],
            out_specs=pl.BlockSpec((tile_m, d_out_p), lambda i: (i, 0)),
        ),
        compiler_params=pltpu.CompilerParams(
            dimension_semantics=("parallel",),
            vmem_limit_bytes=vmem_limit,
        ),
        cost_estimate=cost,
    )(xm, w1_t, b1, w2_t, b2)

    out = out[:M, :d_out]
    return out.reshape(*lead, d_out)


def mlp_reference(x, w1, b1, w2, b2):
    # w1: (d_h, d_in), w2: (d_out, d_h) -- torch nn.Linear layout; exact GELU.
    h = jnp.einsum("...d,hd->...h", x, w1) + b1
    h = jax.nn.gelu(h, approximate=False)
    return jnp.einsum("...h,oh->...o", h, w2) + b2


if __name__ == "__main__":
    # Small shapes consistent with a ViT MLP block.
    in_features, hidden_features, out_features = 32, 64, 32

    key = jax.random.PRNGKey(0)
    kx1, kx2, kw1, kb1, kw2, kb2 = jax.random.split(key, 6)

    # nn.Linear stores weight as (out_features, in_features)
    w1 = jax.random.normal(kw1, (hidden_features, in_features), jnp.float32) * 0.05
    b1 = jax.random.normal(kb1, (hidden_features,), jnp.float32) * 0.05
    w2 = jax.random.normal(kw2, (out_features, hidden_features), jnp.float32) * 0.05
    b2 = jax.random.normal(kb2, (out_features,), jnp.float32) * 0.05

    # One-time parameter prep (transpose + lane padding), outside the hot path.
    params_f32 = prepare_mlp_params(w1, b1, w2, b2)                       # bit-matches torch
    params_bf16 = prepare_mlp_params(w1, b1, w2, b2, param_dtype=jnp.bfloat16)  # fast path

    # Case 1: token count 16 (single full-extent block, no row padding).
    x1 = jax.random.normal(kx1, (2, 8, in_features), dtype=jnp.float32)
    y1 = jax.block_until_ready(mlp_pallas(x1, params_f32))
    y1_ref = mlp_reference(x1, w1, b1, w2, b2)
    assert y1.shape == (2, 8, out_features)
    assert jnp.allclose(y1, y1_ref, atol=1e-5, rtol=1e-5), "mismatch vs reference (aligned)"

    # Case 2: ragged token count 18 (non-sublane-aligned full block, no row padding).
    x2 = jax.random.normal(kx2, (2, 9, in_features), dtype=jnp.float32)
    y2 = jax.block_until_ready(mlp_pallas(x2, params_f32))
    y2_ref = mlp_reference(x2, w1, b1, w2, b2)
    assert y2.shape == (2, 9, out_features)
    assert jnp.allclose(y2, y2_ref, atol=1e-5, rtol=1e-5), "mismatch vs reference (ragged)"

    # Case 3: bf16 weights + bf16 activations (native bf16 MXU path), looser tolerance.
    y3 = jax.block_until_ready(mlp_pallas(x1.astype(jnp.bfloat16), params_bf16))
    assert y3.shape == (2, 8, out_features)
    assert jnp.allclose(y3.astype(jnp.float32), y1_ref, atol=3e-2, rtol=3e-2), \
        "mismatch vs reference (bf16 path)"

    print("KERNEL_OK")
</pallas_src>

<mosaic_0001>
module attributes {stable_mosaic.version = 11 : i64} {
  func.func @_mlp_kernel(%arg0: i32, %arg1: memref<16x128xf32, #tpu.memory_space<vmem>>, %arg2: memref<128x128xf32, #tpu.memory_space<vmem>>, %arg3: memref<1x128xf32, #tpu.memory_space<vmem>>, %arg4: memref<128x128xf32, #tpu.memory_space<vmem>>, %arg5: memref<1x128xf32, #tpu.memory_space<vmem>>, %arg6: memref<16x128xf32, #tpu.memory_space<vmem>>) attributes {dimension_semantics = [#tpu.dimension_semantics<parallel>], iteration_bounds = array<i64: 1>, scalar_prefetch = 0 : i64, scratch_operands = 0 : i64, tpu.core_type = #tpu.core_type<tc>, window_params = [{transform_indices = @transform_0, window_bounds = array<i64: 16, 128>}, {pipeline_mode = #tpu.pipeline_mode<synchronous>, transform_indices = @transform_1, window_bounds = array<i64: 128, 128>}, {pipeline_mode = #tpu.pipeline_mode<synchronous>, transform_indices = @transform_2, window_bounds = array<i64: 1, 128>}, {pipeline_mode = #tpu.pipeline_mode<synchronous>, transform_indices = @transform_3, window_bounds = array<i64: 128, 128>}, {pipeline_mode = #tpu.pipeline_mode<synchronous>, transform_indices = @transform_4, window_bounds = array<i64: 1, 128>}, {transform_indices = @transform_5, window_bounds = array<i64: 16, 128>}]} {
    %c0 = arith.constant 0 : index
    %c0_0 = arith.constant 0 : index
    %0 = vector.load %arg1[%c0, %c0_0] : memref<16x128xf32, #tpu.memory_space<vmem>>, vector<16x128xf32>
    %c0_1 = arith.constant 0 : index
    %c0_2 = arith.constant 0 : index
    %1 = vector.load %arg2[%c0_1, %c0_2] : memref<128x128xf32, #tpu.memory_space<vmem>>, vector<128x128xf32>
    %cst = arith.constant dense<0.000000e+00> : vector<16x128xf32>
    %2 = tpu.matmul %0, %1, %cst {dimension_numbers = #tpu.dot_dimension_numbers<[1], [0], [0], [1], [0, 0, 1, 1], [], []>} : vector<16x128xf32>, vector<128x128xf32>, vector<16x128xf32> -> vector<16x128xf32>
    %c0_3 = arith.constant 0 : index
    %c0_4 = arith.constant 0 : index
    %3 = vector.load %arg3[%c0_3, %c0_4] : memref<1x128xf32, #tpu.memory_space<vmem>>, vector<1x128xf32>
    %4 = vector.broadcast %3 : vector<1x128xf32> to vector<16x128xf32>
    %5 = arith.addf %2, %4 : vector<16x128xf32>
    %cst_5 = arith.constant 5.000000e-01 : f32
    %6 = vector.broadcast %cst_5 : f32 to vector<16x128xf32>
    %7 = arith.mulf %6, %5 : vector<16x128xf32>
    %cst_6 = arith.constant 0.707106769 : f32
    %8 = vector.broadcast %cst_6 : f32 to vector<16x128xf32>
    %9 = arith.mulf %5, %8 : vector<16x128xf32>
    %10 = math.erf %9 : vector<16x128xf32>
    %cst_7 = arith.constant 1.000000e+00 : f32
    %11 = vector.broadcast %cst_7 : f32 to vector<16x128xf32>
    %12 = arith.addf %11, %10 : vector<16x128xf32>
    %13 = arith.mulf %7, %12 : vector<16x128xf32>
    %c0_8 = arith.constant 0 : index
    %c0_9 = arith.constant 0 : index
    %14 = vector.load %arg4[%c0_8, %c0_9] : memref<128x128xf32, #tpu.memory_space<vmem>>, vector<128x128xf32>
    %cst_10 = arith.constant dense<0.000000e+00> : vector<16x128xf32>
    %15 = tpu.matmul %13, %14, %cst_10 {dimension_numbers = #tpu.dot_dimension_numbers<[1], [0], [0], [1], [0, 0, 1, 1], [], []>} : vector<16x128xf32>, vector<128x128xf32>, vector<16x128xf32> -> vector<16x128xf32>
    %c0_11 = arith.constant 0 : index
    %c0_12 = arith.constant 0 : index
    %16 = vector.load %arg5[%c0_11, %c0_12] : memref<1x128xf32, #tpu.memory_space<vmem>>, vector<1x128xf32>
    %17 = vector.broadcast %16 : vector<1x128xf32> to vector<16x128xf32>
    %18 = arith.addf %15, %17 : vector<16x128xf32>
    %c0_13 = arith.constant 0 : index
    %c0_14 = arith.constant 0 : index
    %19 = vector.load %arg6[%c0_13, %c0_14] : memref<16x128xf32, #tpu.memory_space<vmem>>, vector<16x128xf32>
    tpu.vector_store %arg6[%c0_13, %c0_14], %18 {strides = array<i32>} : memref<16x128xf32, #tpu.memory_space<vmem>>, vector<16x128xf32>,
    return
  }
  func.func @transform_0(%arg0: i32) -> (i32, i32) {
    %c0_i32 = arith.constant 0 : i32
    %c0_i32_0 = arith.constant 0 : i32
    return %arg0, %c0_i32 : i32, i32
  }
  func.func @transform_1(%arg0: i32) -> (i32, i32) {
    %c0_i32 = arith.constant 0 : i32
    %c0_i32_0 = arith.constant 0 : i32
    %c0_i32_1 = arith.constant 0 : i32
    return %c0_i32, %c0_i32_0 : i32, i32
  }
  func.func @transform_2(%arg0: i32) -> (i32, i32) {
    %c0_i32 = arith.constant 0 : i32
    %c0_i32_0 = arith.constant 0 : i32
    %c0_i32_1 = arith.constant 0 : i32
    return %c0_i32, %c0_i32_0 : i32, i32
  }
  func.func @transform_3(%arg0: i32) -> (i32, i32) {
    %c0_i32 = arith.constant 0 : i32
    %c0_i32_0 = arith.constant 0 : i32
    %c0_i32_1 = arith.constant 0 : i32
    return %c0_i32, %c0_i32_0 : i32, i32
  }
  func.func @transform_4(%arg0: i32) -> (i32, i32) {
    %c0_i32 = arith.constant 0 : i32
    %c0_i32_0 = arith.constant 0 : i32
    %c0_i32_1 = arith.constant 0 : i32
    return %c0_i32, %c0_i32_0 : i32, i32
  }
  func.func @transform_5(%arg0: i32) -> (i32, i32) {
    %c0_i32 = arith.constant 0 : i32
    %c0_i32_0 = arith.constant 0 : i32
    return %arg0, %c0_i32 : i32, i32
  }
}

</mosaic_0001>

<llo_original>
// kernel: tpu_custom_call.1
$region0: #{tpu_custom_call.1}
  #allocation0 [shape = 'u32[]', space=smem, size = 0x4, offset = 0x4, fixed_abs, tag = 'smem constant byte address 0x4 - core index']
  #allocation1 [shape = 'u32[144,128]{1,0:T(1,128)}', space=vmem, size = 0x12000, scoped, tag = 'internal scratch']
  %s0 = inlined_call_operand.hbm [shape: f32[16,128], index: 0, kind: input, shape index: {}]
  %s1 = inlined_call_operand.hbm [shape: f32[128,128], index: 1, kind: input, shape index: {}]
  %s2 = inlined_call_operand.vmem [shape: f32[1,128], index: 2, kind: input, shape index: {}]
  %s3 = inlined_call_operand.hbm [shape: f32[128,128], index: 3, kind: input, shape index: {}]
  %s4 = inlined_call_operand.vmem [shape: f32[1,128], index: 4, kind: input, shape index: {}]
  %s5 = inlined_call_operand.hbm [shape: f32[16,128], index: 5, kind: output, shape index: {}]
  %s6 = sld [smem:[#allocation0]]
  $region42: #{tpu_custom_call.1} parent=0
    _
  %s8 = ssub.s32 1, %s6
  %s9 = scalar_select 0, %s8, %s6
  $region1: #{tpu_custom_call.1} parent=0
    #allocation2 [shape = 'u8[8192]{0}', space=vmem, size = 0x2000, scoped, tag = 'input window, operand 0, single buffered']
    #allocation3 [shape = 's32[1]{0}', space=sflag, size = 0x4, scoped, tag = 'scoped memory for tpu_custom_call.1']
    #allocation4 [shape = 's32[1]{0}', space=sflag, size = 0x4, scoped, tag = 'scoped memory for tpu_custom_call.1']
    #allocation5 [shape = 'u8[65536]{0}', space=vmem, size = 0x10000, scoped, tag = 'input window, operand 1, single buffered']
    #allocation6 [shape = 's32[1]{0}', space=sflag, size = 0x4, scoped, tag = 'scoped memory for tpu_custom_call.1']
    #allocation7 [shape = 'u8[65536]{0}', space=vmem, size = 0x10000, scoped, tag = 'input window, operand 3, single buffered']
    #allocation8 [shape = 'u8[8192]{0}', space=vmem, size = 0x2000, scoped, tag = 'output window, operand 0, single buffered']
    %10 = vsyncpa [#allocation3], 0
    %11 = vsyncpa [#allocation6], 0
    %12 = vsyncpa [#allocation4], 0
    // Predicated region
    $region2: #{tpu_custom_call.1} parent=1 // pred_check
      _
    $region3: #{tpu_custom_call.1} parent=1 // pred_check_branch
      %14 = sbr.rel (0) target = $region5
    $region4: #{tpu_custom_call.1} parent=1 // pred_region
      %s16 = ssub.s32 256, 256
      %17 = vsyncadd [#allocation3], %s16
      %s18 = sshll.u32 [#allocation2], 4
      %s19 = int_to_ptr.vmem [resolvable:$true] %s18
      %24 = dma.hbm_to_vmem [thread:$0]  %s0, 256, %s19, [#allocation3], 128, 128, 8
    $region5: #{tpu_custom_call.1} parent=1 // pred_fallthru
      _
    // Predicated region
    $region6: #{tpu_custom_call.1} parent=1 // pred_check
      _
    $region7: #{tpu_custom_call.1} parent=1 // pred_check_branch
      %26 = sbr.rel (0) target = $region9
    $region8: #{tpu_custom_call.1} parent=1 // pred_region
      %s28 = ssub.s32 2048, 2048
      %29 = vsyncadd [#allocation6], %s28
      %s30 = sshll.u32 [#allocation5], 4
      %s31 = int_to_ptr.vmem [resolvable:$true] %s30
      %36 = dma.hbm_to_vmem [thread:$0]  %s1, 2048, %s31, [#allocation6], 128, 128, 8
    $region9: #{tpu_custom_call.1} parent=1 // pred_fallthru
      _
    // Predicated region
    $region10: #{tpu_custom_call.1} parent=1 // pred_check
      _
    $region11: #{tpu_custom_call.1} parent=1 // pred_check_branch
      %38 = sbr.rel (0) target = $region13
    $region12: #{tpu_custom_call.1} parent=1 // pred_region
      _
    $region13: #{tpu_custom_call.1} parent=1 // pred_fallthru
      _
    // Predicated region
    $region14: #{tpu_custom_call.1} parent=1 // pred_check
      _
    $region15: #{tpu_custom_call.1} parent=1 // pred_check_branch
      %40 = sbr.rel (0) target = $region17
    $region16: #{tpu_custom_call.1} parent=1 // pred_region
      %s42 = ssub.s32 2048, 2048
      %43 = vsyncadd [#allocation6], %s42
      %s44 = sshll.u32 [#allocation7], 4
      %s45 = int_to_ptr.vmem [resolvable:$true] %s44
      %50 = dma.hbm_to_vmem [thread:$0]  %s3, 2048, %s45, [#allocation6], 128, 128, 8
    $region17: #{tpu_custom_call.1} parent=1 // pred_fallthru
      _
    // Predicated region
    $region18: #{tpu_custom_call.1} parent=1 // pred_check
      _
    $region19: #{tpu_custom_call.1} parent=1 // pred_check_branch
      %52 = sbr.rel (0) target = $region21
    $region20: #{tpu_custom_call.1} parent=1 // pred_region
      _
    $region21: #{tpu_custom_call.1} parent=1 // pred_fallthru
      _
    // Predicated region
    $region22: #{tpu_custom_call.1} parent=1 // pred_check
      _
    $region23: #{tpu_custom_call.1} parent=1 // pred_check_branch
      %54 = sbr.rel (0) target = $region25
    $region24: #{tpu_custom_call.1} parent=1 // pred_region
      %55 = dma.done [#allocation3], 256
    $region25: #{tpu_custom_call.1} parent=1 // pred_fallthru
      _
    // Predicated region
    $region26: #{tpu_custom_call.1} parent=1 // pred_check
      _
    $region27: #{tpu_custom_call.1} parent=1 // pred_check_branch
      %57 = sbr.rel (0) target = $region29
    $region28: #{tpu_custom_call.1} parent=1 // pred_region
      %58 = dma.done [#allocation6], 2048
    $region29: #{tpu_custom_call.1} parent=1 // pred_fallthru
      _
    // Predicated region
    $region30: #{tpu_custom_call.1} parent=1 // pred_check
      _
    $region31: #{tpu_custom_call.1} parent=1 // pred_check_branch
      %60 = sbr.rel (0) target = $region33
    $region32: #{tpu_custom_call.1} parent=1 // pred_region
      %61 = dma.done [#allocation6], 2048
    $region33: #{tpu_custom_call.1} parent=1 // pred_fallthru
      _
    %v62 = vld [vmem:[#allocation2] sm:$0xff]
    %v63 = vld [vmem:[#allocation2 + $0x8] sm:$0xff]
    %v64 = vld [vmem:[#allocation5] sm:$0xff]
    %v65 = vld [vmem:[#allocation5 + $0x8] sm:$0xff]
    %v66 = vld [vmem:[#allocation5 + $0x10] sm:$0xff]
    %v67 = vld [vmem:[#allocation5 + $0x18] sm:$0xff]
    %v68 = vld [vmem:[#allocation5 + $0x20] sm:$0xff]
    %v69 = vld [vmem:[#allocation5 + $0x28] sm:$0xff]
    %v70 = vld [vmem:[#allocation5 + $0x30] sm:$0xff]
    %v71 = vld [vmem:[#allocation5 + $0x38] sm:$0xff]
    %v72 = vld [vmem:[#allocation5 + $0x40] sm:$0xff]
    %v73 = vld [vmem:[#allocation5 + $0x48] sm:$0xff]
    %v74 = vld [vmem:[#allocation5 + $0x50] sm:$0xff]
    %v75 = vld [vmem:[#allocation5 + $0x58] sm:$0xff]
    %v76 = vld [vmem:[#allocation5 + $0x60] sm:$0xff]
    %v77 = vld [vmem:[#allocation5 + $0x68] sm:$0xff]
    %v78 = vld [vmem:[#allocation5 + $0x70] sm:$0xff]
    %v79 = vld [vmem:[#allocation5 + $0x78] sm:$0xff]
    %v80 = vld [vmem:[%s2] sm:$0x1]
    %v82 = vlaneseq
    %v83 = vshrl.u32 %v82, 7
    %v84 = vsub.s32 0, %v83
    %v85 = vrot.slane %v80, %v84
    %87 = vmatprep.subr.mxu0 0.0
    %88 = vmatpush1.msra.mxu0 %v64
    %89 = vmatprep.subr.mxu0 0.0
    %90 = vmatpush1.msra.mxu0 %v65
    %91 = vmatprep.subr.mxu0 0.0
    %92 = vmatpush1.msra.mxu0 %v66
    %93 = vmatprep.subr.mxu0 0.0
    %94 = vmatpush1.msra.mxu0 %v67
    %95 = vmatprep.subr.mxu0 0.0
    %96 = vmatpush1.msra.mxu0 %v68
    %97 = vmatprep.subr.mxu0 0.0
    %98 = vmatpush1.msra.mxu0 %v69
    %99 = vmatprep.subr.mxu0 0.0
    %100 = vmatpush1.msra.mxu0 %v70
    %101 = vmatprep.subr.mxu0 0.0
    %102 = vmatpush1.msra.mxu0 %v71
    %103 = vmatprep.subr.mxu0 0.0
    %104 = vmatpush1.msra.mxu0 %v72
    %105 = vmatprep.subr.mxu0 0.0
    %106 = vmatpush1.msra.mxu0 %v73
    %107 = vmatprep.subr.mxu0 0.0
    %108 = vmatpush1.msra.mxu0 %v74
    %109 = vmatprep.subr.mxu0 0.0
    %110 = vmatpush1.msra.mxu0 %v75
    %111 = vmatprep.subr.mxu0 0.0
    %112 = vmatpush1.msra.mxu0 %v76
    %113 = vmatprep.subr.mxu0 0.0
    %114 = vmatpush1.msra.mxu0 %v77
    %115 = vmatprep.subr.mxu0 0.0
    %116 = vmatpush1.msra.mxu0 %v78
    %117 = vmatprep.subr.mxu0 0.0
    %118 = vmatpush1.msra.mxu0 %v79
    %119 = vmatprep.subr.mxu0 0.0
    %120 = vmatpush1.msra.mxu0 0.0
    %121 = vmatprep.subr.mxu0 0.0
    %122 = vmatpush1.msra.mxu0 0.0
    %123 = vmatprep.subr.mxu0 0.0
    %124 = vmatpush1.msra.mxu0 0.0
    %125 = vmatprep.subr.mxu0 0.0
    %126 = vmatpush1.msra.mxu0 0.0
    %127 = vmatprep.subr.mxu0 0.0
    %128 = vmatpush1.msra.mxu0 0.0
    %129 = vmatprep.subr.mxu0 0.0
    %130 = vmatpush1.msra.mxu0 0.0
    %131 = vmatprep.subr.mxu0 0.0
    %132 = vmatpush1.msra.mxu0 0.0
    %133 = vmatprep.subr.mxu0 0.0
    %134 = vmatpush1.msra.mxu0 0.0
    %135 = vmatprep.subr.mxu0 0.0
    %136 = vmatpush1.msra.mxu0 0.0
    %137 = vmatprep.subr.mxu0 0.0
    %138 = vmatpush1.msra.mxu0 0.0
    %139 = vmatprep.subr.mxu0 0.0
    %140 = vmatpush1.msra.mxu0 0.0
    %141 = vmatprep.subr.mxu0 0.0
    %142 = vmatpush1.msra.mxu0 0.0
    %143 = vmatprep.subr.mxu0 0.0
    %144 = vmatpush1.msra.mxu0 0.0
    %145 = vmatprep.subr.mxu0 0.0
    %146 = vmatpush1.msra.mxu0 0.0
    %147 = vmatprep.subr.mxu0 0.0
    %148 = vmatpush1.msra.mxu0 0.0
    %149 = vmatprep.subr.mxu0 0.0
    %150 = vmatpush1.msra.mxu0 0.0
    %151 = vmatprep.mubr.f32.mxu0 0.0
    %152 = vmatmul.mubr.f32.gmra.mrb[0].mxu0 %v62
    %v153 = vpop.f32.mrb[0].mxu0
    %v154 = vadd.f32 %v85, %v153
    %v155 = vpop.f32.mrb[0].mxu0
    %156 = vmatprep.mubr.f32.mxu0 0.0
    %157 = vmatmul.mubr.f32.gmra.mrb[0].mxu0 %v63
    %v158 = vpop.f32.mrb[0].mxu0
    %v159 = vadd.f32 %v85, %v158
    %v160 = vpop.f32.mrb[0].mxu0
    %161 = vdwg.mxu0
    %v162 = vmul.f32 %v154, 0.5
    %v163 = vmul.f32 %v159, 0.5
    %v164 = vmul.f32 %v154, 0.70710677
    %v165 = vmul.f32 %v159, 0.70710677
    %v166 = verf.f32.pop %v164
    %v167 = verf.f32.pop %v165
    %v168 = vadd.f32 %v166, 1.0
    %v169 = vadd.f32 %v167, 1.0
    %v170 = vmul.f32 %v162, %v168
    %v171 = vmul.f32 %v163, %v169
    %v172 = vld [vmem:[#allocation7] sm:$0xff]
    %v173 = vld [vmem:[#allocation7 + $0x8] sm:$0xff]
    %v174 = vld [vmem:[#allocation7 + $0x10] sm:$0xff]
    %v175 = vld [vmem:[#allocation7 + $0x18] sm:$0xff]
    %v176 = vld [vmem:[#allocation7 + $0x20] sm:$0xff]
    %v177 = vld [vmem:[#allocation7 + $0x28] sm:$0xff]
    %v178 = vld [vmem:[#allocation7 + $0x30] sm:$0xff]
    %v179 = vld [vmem:[#allocation7 + $0x38] sm:$0xff]
    %v180 = vld [vmem:[#allocation7 + $0x40] sm:$0xff]
    %v181 = vld [vmem:[#allocation7 + $0x48] sm:$0xff]
    %v182 = vld [vmem:[#allocation7 + $0x50] sm:$0xff]
    %v183 = vld [vmem:[#allocation7 + $0x58] sm:$0xff]
    %v184 = vld [vmem:[#allocation7 + $0x60] sm:$0xff]
    %v185 = vld [vmem:[#allocation7 + $0x68] sm:$0xff]
    %v186 = vld [vmem:[#allocation7 + $0x70] sm:$0xff]
    %v187 = vld [vmem:[#allocation7 + $0x78] sm:$0xff]
    %v188 = vld [vmem:[%s4] sm:$0x1]
    %v190 = vlaneseq
    %v191 = vshrl.u32 %v190, 7
    %v192 = vsub.s32 0, %v191
    %v193 = vrot.slane %v188, %v192
    %195 = vmatprep.subr.mxu0 0.0
    %196 = vmatpush1.msra.mxu0 %v172
    %197 = vmatprep.subr.mxu0 0.0
    %198 = vmatpush1.msra.mxu0 %v173
    %199 = vmatprep.subr.mxu0 0.0
    %200 = vmatpush1.msra.mxu0 %v174
    %201 = vmatprep.subr.mxu0 0.0
    %202 = vmatpush1.msra.mxu0 %v175
    %203 = vmatprep.subr.mxu0 0.0
    %204 = vmatpush1.msra.mxu0 %v176
    %205 = vmatprep.subr.mxu0 0.0
    %206 = vmatpush1.msra.mxu0 %v177
    %207 = vmatprep.subr.mxu0 0.0
    %208 = vmatpush1.msra.mxu0 %v178
    %209 = vmatprep.subr.mxu0 0.0
    %210 = vmatpush1.msra.mxu0 %v179
    %211 = vmatprep.subr.mxu0 0.0
    %212 = vmatpush1.msra.mxu0 %v180
    %213 = vmatprep.subr.mxu0 0.0
    %214 = vmatpush1.msra.mxu0 %v181
    %215 = vmatprep.subr.mxu0 0.0
    %216 = vmatpush1.msra.mxu0 %v182
    %217 = vmatprep.subr.mxu0 0.0
    %218 = vmatpush1.msra.mxu0 %v183
    %219 = vmatprep.subr.mxu0 0.0
    %220 = vmatpush1.msra.mxu0 %v184
    %221 = vmatprep.subr.mxu0 0.0
    %222 = vmatpush1.msra.mxu0 %v185
    %223 = vmatprep.subr.mxu0 0.0
    %224 = vmatpush1.msra.mxu0 %v186
    %225 = vmatprep.subr.mxu0 0.0
    %226 = vmatpush1.msra.mxu0 %v187
    %227 = vmatprep.subr.mxu0 0.0
    %228 = vmatpush1.msra.mxu0 0.0
    %229 = vmatprep.subr.mxu0 0.0
    %230 = vmatpush1.msra.mxu0 0.0
    %231 = vmatprep.subr.mxu0 0.0
    %232 = vmatpush1.msra.mxu0 0.0
    %233 = vmatprep.subr.mxu0 0.0
    %234 = vmatpush1.msra.mxu0 0.0
    %235 = vmatprep.subr.mxu0 0.0
    %236 = vmatpush1.msra.mxu0 0.0
    %237 = vmatprep.subr.mxu0 0.0
    %238 = vmatpush1.msra.mxu0 0.0
    %239 = vmatprep.subr.mxu0 0.0
    %240 = vmatpush1.msra.mxu0 0.0
    %241 = vmatprep.subr.mxu0 0.0
    %242 = vmatpush1.msra.mxu0 0.0
    %243 = vmatprep.subr.mxu0 0.0
    %244 = vmatpush1.msra.mxu0 0.0
    %245 = vmatprep.subr.mxu0 0.0
    %246 = vmatpush1.msra.mxu0 0.0
    %247 = vmatprep.subr.mxu0 0.0
    %248 = vmatpush1.msra.mxu0 0.0
    %249 = vmatprep.subr.mxu0 0.0
    %250 = vmatpush1.msra.mxu0 0.0
    %251 = vmatprep.subr.mxu0 0.0
    %252 = vmatpush1.msra.mxu0 0.0
    %253 = vmatprep.subr.mxu0 0.0
    %254 = vmatpush1.msra.mxu0 0.0
    %255 = vmatprep.subr.mxu0 0.0
    %256 = vmatpush1.msra.mxu0 0.0
    %257 = vmatprep.subr.mxu0 0.0
    %258 = vmatpush1.msra.mxu0 0.0
    %259 = vmatprep.mubr.f32.mxu0 0.0
    %260 = vmatmul.mubr.f32.gmra.mrb[0].mxu0 %v170
    %v261 = vpop.f32.mrb[0].mxu0
    %v262 = vadd.f32 %v193, %v261
    %v263 = vpop.f32.mrb[0].mxu0
    %264 = vmatprep.mubr.f32.mxu0 0.0
    %265 = vmatmul.mubr.f32.gmra.mrb[0].mxu0 %v171
    %v266 = vpop.f32.mrb[0].mxu0
    %v267 = vadd.f32 %v193, %v266
    %v268 = vpop.f32.mrb[0].mxu0
    %269 = vdwg.mxu0
    %270 = vst [vmem:[#allocation8] sm:$0xff] %v262
    %271 = vst [vmem:[#allocation8 + $0x8] sm:$0xff] %v267
    // Predicated region
    $region34: #{tpu_custom_call.1} parent=1 // pred_check
      _
    $region35: #{tpu_custom_call.1} parent=1 // pred_check_branch
      %273 = sbr.rel (0) target = $region37
    $region36: #{tpu_custom_call.1} parent=1 // pred_region
      %s275 = ssub.s32 256, 256
      %276 = vsyncadd [#allocation4], %s275
      %s277 = sshll.u32 [#allocation8], 4
      %s278 = int_to_ptr.vmem [resolvable:$true] %s277
      %283 = dma.vmem_to_hbm [thread:$0]  %s278, 256, %s5, [#allocation4], 128, 128, 8
    $region37: #{tpu_custom_call.1} parent=1 // pred_fallthru
      _
    // Predicated region
    $region38: #{tpu_custom_call.1} parent=1 // pred_check
      _
    $region39: #{tpu_custom_call.1} parent=1 // pred_check_branch
      %285 = sbr.rel (0) target = $region41
    $region40: #{tpu_custom_call.1} parent=1 // pred_region
      %286 = dma.done [#allocation4], 256
    $region41: #{tpu_custom_call.1} parent=1 // pred_fallthru
      _
    %287 = vsyncpa [#allocation3], 1
    %288 = vsyncpa [#allocation6], 1
    %289 = vsyncpa [#allocation4], 1

</llo_original>
